<compile_context>
chip_gen: v5e
topology: v5e:2x2
jax: 0.10.0
libtpu: 0.0.40
codegen_flags: <defaults>
</compile_context>

<pallas_src>
import functools

import jax
import jax.numpy as jnp
from jax.experimental import pallas as pl
from jax.experimental.pallas import tpu as pltpu


def _last_activation_kernel(x_ref, o_ref, *, C, sig_dtype):
    """One lane-dense (rows, cols) tile of the flattened (N*C, H*W) tensor.

    Row r of the flattened view belongs to channel r % C; channel 0 gets sigmoid,
    every other channel gets ReLU.
    """
    i = pl.program_id(0)                      # row-block index
    br = x_ref.shape[0]
    start = i * br                            # first global row of this block

    x = x_ref[...]
    # ReLU in the storage dtype (cheap VPU max).
    relu = jnp.maximum(x, jnp.zeros((), x.dtype)).astype(o_ref.dtype)

    # Scalar-only test: does this row-block contain any channel-0 rows?
    # Offset (within the block) of the first row whose global index is a multiple of C.
    first_sig = (C - start % C) % C
    has_sig = first_sig < br

    @pl.when(has_sig)
    def _():
        # Per-row channel-0 mask, built only on this path.
        row_ids = jax.lax.broadcasted_iota(jnp.int32, (br, 1), 0)
        g = start + row_ids
        if C & (C - 1) == 0:                  # C is a power of two (incl. C == 1)
            is_sig = (g & (C - 1)) == 0
        else:
            is_sig = (g % C) == 0
        sig = jax.nn.sigmoid(x.astype(sig_dtype)).astype(o_ref.dtype)
        o_ref[...] = jnp.where(is_sig, sig, relu)

    @pl.when(jnp.logical_not(has_sig))
    def _():
        o_ref[...] = relu                     # pure ReLU block: no EUP / mask work


def last_activation(x, *, target_block_bytes=4 * 1024 * 1024):
    """Pallas equivalent of LastActivation.forward for NCHW input."""
    N, C, H, W = x.shape
    R, HW = N * C, H * W
    itemsize = jnp.dtype(x.dtype).itemsize
    x2 = x.reshape(R, HW)                     # contiguous, free reshape

    # ---- Block selection: large, lane-dense blocks (~target_block_bytes each).
    if HW % 128 == 0:
        # Columns sized so that even an 8-row block stays within the byte budget.
        max_cols = max(128, (target_block_bytes // max(1, 8 * itemsize)) // 128 * 128)
        bc = min(HW, max_cols)
    else:
        # Full trailing dim is always a legal block; rare (non-128-aligned spatial).
        bc = HW
    max_rows = max(8, (target_block_bytes // max(1, bc * itemsize)) // 8 * 8)
    br = R if R <= max_rows else max_rows

    # ---- Guarantee >= 2 blocks along a parallel axis so v7x's 2 TCs share the work.
    if pl.cdiv(R, br) * pl.cdiv(HW, bc) < 2:
        if R >= 16:
            br = ((R + 1) // 2 + 7) // 8 * 8          # ~half the rows, multiple of 8
        elif HW % 128 == 0 and HW >= 256:
            bc = max(128, (HW // 2) // 128 * 128)     # split columns instead
        # else: tensor is tiny; a single block is fine.

    grid = (pl.cdiv(R, br), pl.cdiv(HW, bc))

    # 2x-in + 2x-out double buffering => ~4x block bytes resident; leave headroom,
    # but cap at 48 MiB so the v7x 64 MiB-per-TC VMEM keeps slack for vregs/spill.
    block_bytes = br * bc * itemsize
    vmem_limit = int(min(48 * 1024 * 1024, max(32 * 1024 * 1024, 5 * block_bytes)))

    # Sigmoid compute dtype: native bf16 on chips with bf16 EUP (v6e/v7x); f32 for
    # f32 inputs. (Mosaic legalizes bf16 transcendentals on v5e by internal upcast.)
    sig_dtype = x.dtype if x.dtype == jnp.bfloat16 else jnp.float32

    kernel = functools.partial(_last_activation_kernel, C=C, sig_dtype=sig_dtype)

    out2 = pl.pallas_call(
        kernel,
        out_shape=jax.ShapeDtypeStruct((R, HW), x.dtype),
        grid=grid,
        in_specs=[pl.BlockSpec((br, bc), lambda i, j: (i, j))],
        out_specs=pl.BlockSpec((br, bc), lambda i, j: (i, j)),
        compiler_params=pltpu.CompilerParams(
            dimension_semantics=("parallel", "parallel"),
            vmem_limit_bytes=vmem_limit,
        ),
        cost_estimate=pl.CostEstimate(
            flops=int(R * HW),                       # ReLU max + select over everything
            transcendentals=int(R * HW),             # sigmoid evaluated block-wide when present
            bytes_accessed=int(2 * R * HW * itemsize),
        ),
    )(x2)

    return out2.reshape(N, C, H, W)


if __name__ == "__main__":
    key = jax.random.PRNGKey(0)
    N, C, H, W = 2, 4, 16, 16
    x = jax.random.normal(key, (N, C, H, W), dtype=jnp.float32)

    out = jax.block_until_ready(last_activation(x))

    # Pure-JAX reference (matches the PyTorch forward exactly).
    ref = jnp.concatenate(
        [jax.nn.sigmoid(x[:, 0:1, :, :]), jnp.maximum(x[:, 1:, :, :], 0.0)],
        axis=1,
    )
    assert out.shape == x.shape
    assert jnp.allclose(out, ref, atol=1e-6, rtol=1e-6)

    print("KERNEL_OK")
</pallas_src>

<mosaic_0001>
module attributes {stable_mosaic.version = 11 : i64} {
  func.func @_last_activation_kernel(%arg0: i32, %arg1: i32, %arg2: memref<8x128xf32, #tpu.memory_space<vmem>>, %arg3: memref<8x128xf32, #tpu.memory_space<vmem>>) attributes {dimension_semantics = [#tpu.dimension_semantics<parallel>, #tpu.dimension_semantics<parallel>], iteration_bounds = array<i64: 1, 2>, scalar_prefetch = 0 : i64, scratch_operands = 0 : i64, tpu.core_type = #tpu.core_type<tc>, window_params = [{transform_indices = @transform_0, window_bounds = array<i64: 8, 128>}, {transform_indices = @transform_1, window_bounds = array<i64: 8, 128>}]} {
    %c8_i32 = arith.constant 8 : i32
    %0 = arith.muli %arg0, %c8_i32 : i32
    %c0 = arith.constant 0 : index
    %c0_0 = arith.constant 0 : index
    %1 = vector.load %arg2[%c0, %c0_0] : memref<8x128xf32, #tpu.memory_space<vmem>>, vector<8x128xf32>
    %cst = arith.constant 0.000000e+00 : f32
    %2 = vector.broadcast %cst : f32 to vector<8x128xf32>
    %3 = arith.maximumf %1, %2 : vector<8x128xf32>
    %c4_i32 = arith.constant 4 : i32
    %c0_i32 = arith.constant 0 : i32
    %4 = arith.cmpi eq, %c4_i32, %c0_i32 : i32
    %c1_i32 = arith.constant 1 : i32
    %5 = arith.select %4, %c1_i32, %c4_i32 : i32
    %6 = arith.remsi %0, %5 : i32
    %c0_i32_1 = arith.constant 0 : i32
    %7 = arith.cmpi ne, %6, %c0_i32_1 : i32
    %c0_i32_2 = arith.constant 0 : i32
    %8 = arith.cmpi slt, %6, %c0_i32_2 : i32
    %c0_i32_3 = arith.constant 0 : i32
    %9 = arith.cmpi slt, %5, %c0_i32_3 : i32
    %10 = arith.xori %8, %9 : i1
    %11 = arith.andi %10, %7 : i1
    %12 = arith.addi %6, %5 : i32
    %13 = arith.select %11, %12, %6 : i32
    %c4_i32_4 = arith.constant 4 : i32
    %14 = arith.subi %c4_i32_4, %13 : i32
    %c4_i32_5 = arith.constant 4 : i32
    %c0_i32_6 = arith.constant 0 : i32
    %15 = arith.cmpi eq, %c4_i32_5, %c0_i32_6 : i32
    %c1_i32_7 = arith.constant 1 : i32
    %16 = arith.select %15, %c1_i32_7, %c4_i32_5 : i32
    %17 = arith.remsi %14, %16 : i32
    %c0_i32_8 = arith.constant 0 : i32
    %18 = arith.cmpi ne, %17, %c0_i32_8 : i32
    %c0_i32_9 = arith.constant 0 : i32
    %19 = arith.cmpi slt, %17, %c0_i32_9 : i32
    %c0_i32_10 = arith.constant 0 : i32
    %20 = arith.cmpi slt, %16, %c0_i32_10 : i32
    %21 = arith.xori %19, %20 : i1
    %22 = arith.andi %21, %18 : i1
    %23 = arith.addi %17, %16 : i32
    %24 = arith.select %22, %23, %17 : i32
    %c8_i32_11 = arith.constant 8 : i32
    %25 = arith.cmpi slt, %24, %c8_i32_11 : i32
    %26 = arith.extui %25 : i1 to i32
    %c0_i32_12 = arith.constant 0 : i32
    %27 = arith.cmpi ne, %26, %c0_i32_12 : i32
    scf.if %27 {
      %31 = tpu.iota {dimensions = array<i32: 0>} : vector<8x1xi32>
      %32 = vector.broadcast %0 : i32 to vector<8x1xi32>
      %33 = arith.addi %32, %31 : vector<8x1xi32>
      %c3_i32 = arith.constant 3 : i32
      %34 = vector.broadcast %c3_i32 : i32 to vector<8x1xi32>
      %35 = arith.andi %33, %34 : vector<8x1xi32>
      %c0_i32_14 = arith.constant 0 : i32
      %36 = vector.broadcast %c0_i32_14 : i32 to vector<8x1xi32>
      %37 = arith.cmpi eq, %35, %36 : vector<8x1xi32>
      %38 = arith.negf %1 : vector<8x128xf32>
      %39 = math.exp %38 : vector<8x128xf32>
      %cst_15 = arith.constant 1.000000e+00 : f32
      %40 = vector.broadcast %cst_15 : f32 to vector<8x128xf32>
      %41 = arith.addf %40, %39 : vector<8x128xf32>
      %42 = arith.divf %40, %41 : vector<8x128xf32>
      %43 = vector.shape_cast %37 : vector<8x1xi1> to vector<8x1xi1>
      %44 = vector.broadcast %43 : vector<8x1xi1> to vector<8x128xi1>
      %45 = arith.select %44, %42, %3 : vector<8x128xi1>, vector<8x128xf32>
      %c0_16 = arith.constant 0 : index
      %c0_17 = arith.constant 0 : index
      %46 = vector.load %arg3[%c0_16, %c0_17] : memref<8x128xf32, #tpu.memory_space<vmem>>, vector<8x128xf32>
      tpu.vector_store %arg3[%c0_16, %c0_17], %45 {strides = array<i32>} : memref<8x128xf32, #tpu.memory_space<vmem>>, vector<8x128xf32>,
    } else {
    }
    %true = arith.constant true
    %28 = arith.xori %25, %true : i1
    %29 = arith.extui %28 : i1 to i32
    %c0_i32_13 = arith.constant 0 : i32
    %30 = arith.cmpi ne, %29, %c0_i32_13 : i32
    scf.if %30 {
      %c0_14 = arith.constant 0 : index
      %c0_15 = arith.constant 0 : index
      %31 = vector.load %arg3[%c0_14, %c0_15] : memref<8x128xf32, #tpu.memory_space<vmem>>, vector<8x128xf32>
      tpu.vector_store %arg3[%c0_14, %c0_15], %3 {strides = array<i32>} : memref<8x128xf32, #tpu.memory_space<vmem>>, vector<8x128xf32>,
    } else {
    }
    return
  }
  func.func @transform_0(%arg0: i32, %arg1: i32) -> (i32, i32) {
    %c0_i32 = arith.constant 0 : i32
    return %arg0, %arg1 : i32, i32
  }
  func.func @transform_1(%arg0: i32, %arg1: i32) -> (i32, i32) {
    %c0_i32 = arith.constant 0 : i32
    return %arg0, %arg1 : i32, i32
  }
}

</mosaic_0001>

<llo_original>
// kernel: tpu_custom_call.1
$region0: #{tpu_custom_call.1}
  #allocation0 [shape = 'u32[]', space=smem, size = 0x4, offset = 0x4, fixed_abs, tag = 'smem constant byte address 0x4 - core index']
  #allocation1 [shape = 'u32[72,128]{1,0:T(1,128)}', space=vmem, size = 0x9000, scoped, tag = 'internal scratch']
  %s0 = inlined_call_operand.hbm [shape: f32[8,256], index: 0, kind: input, shape index: {}]
  %s1 = inlined_call_operand.hbm [shape: f32[8,256], index: 1, kind: output, shape index: {}]
  %s2 = sld [smem:[#allocation0]]
  $region49: #{tpu_custom_call.1} parent=0
    _
  %s4 = ssub.s32 1, %s2
  %s5 = scalar_select 0, %s4, %s2
  $region1: #{tpu_custom_call.1} parent=0
    #allocation2 [shape = 'u8[8192]{0}', space=vmem, size = 0x2000, scoped, tag = 'input window, operand 0']
    #allocation3 [shape = 's32[2]{0}', space=sflag, size = 0x8, scoped, tag = 'scoped memory for tpu_custom_call.1']
    #allocation4 [shape = 's32[2]{0}', space=sflag, size = 0x8, scoped, tag = 'scoped memory for tpu_custom_call.1']
    #allocation5 [shape = 'u8[8192]{0}', space=vmem, size = 0x2000, scoped, tag = 'output window, operand 0']
    %6 = vsyncpa [#allocation3], 0
    %s7 = scalar_lea.sflag [#allocation3], 1
    %8 = vsyncpa %s7, 0
    %9 = vsyncpa [#allocation4], 0
    %s10 = scalar_lea.sflag [#allocation4], 1
    %11 = vsyncpa %s10, 0
    loop: start=0, step=1, limit=4
    $region2: #{tpu_custom_call.1} parent=1 // loop_pre_header
      _
    $region3: #{tpu_custom_call.1} parent=1 // loop_header
      %s13 = sphi 0, %s17
      %p14 = scmp.ge.s32.totalorder %s13, 4
      %s20 = sphi 0, %s32
      %s21 = sphi 0, %s28
      %s22 = sphi 0, %s20
      %s23 = sphi 0, %s21
      %s24 = sphi 0, %s22
      %s25 = sphi 0, %s23
      %s37 = sphi 0, %s39
      %s40 = sphi 0, %s37
      %s41 = sphi 0, %s40
      %s57 = sphi 0, %s41
      %s65 = sphi 0, %s67
      %s68 = sphi 0, %s65
      %s69 = sphi 0, %s68
      %s85 = sphi 0, %s69
    $region4: #{tpu_custom_call.1} parent=1 // loop_header_branch
      %16 = sbr.rel (%p14) target = $region8
    $region5: #{tpu_custom_call.1} parent=1 // loop_body
      %s18 = ssub.s32 %s13, 1
      %s19 = ssub.s32 %s13, 2
      %s26 = sadd.s32 1, %s21
      %p27 = scmp.ge.s32.totalorder %s26, 2
      %s28 = scalar_select %p27, 0, %s26
      %s29 = sadd.s32 1, %s20
      %s30 = scalar_select %p27, %s29, %s20
      %p31 = scmp.ge.s32.totalorder %s30, 1
      %s32 = scalar_select %p31, 0, %s30
      %s33 = ssub.s32 %s20, %s32
      %s34 = ssub.s32 %s21, %s28
      %s35 = sor.u32 %s33, %s34
      %p36 = scmp.eq.s32.totalorder %s35, 0
      %s38 = sadd.s32 %s37, 1
      %s39 = scalar_select %p36, %s37, %s38
      %p42 = pneg %p36
      %p43 = scmp.eq.s32.totalorder %s13, 1
      %p44 = por %p42, %p43
      %p45 = scmp.ne.s32.totalorder %s37, %s40
      %p46 = scmp.eq.s32.totalorder %s13, 0
      %p47 = por %p45, %p46
      %p48 = scmp.ne.s32.totalorder %s37, %s40
      %p49 = scmp.eq.s32.totalorder %s18, 1
      %p50 = por %p48, %p49
      %p51 = scmp.ne.s32.totalorder %s40, %s41
      %p52 = scmp.eq.s32.totalorder %s18, 0
      %p53 = por %p51, %p52
      %p54 = scmp.ne.s32.totalorder %s40, %s41
      %p55 = scmp.eq.s32.totalorder %s19, 1
      %p56 = por %p54, %p55
      %p58 = scmp.ne.s32.totalorder %s41, %s57
      %p59 = scmp.eq.s32.totalorder %s19, 0
      %p60 = por %p58, %p59
      %s61 = ssub.s32 %s20, %s32
      %s62 = ssub.s32 %s21, %s28
      %s63 = sor.u32 %s61, %s62
      %p64 = scmp.eq.s32.totalorder %s63, 0
      %s66 = sadd.s32 %s65, 1
      %s67 = scalar_select %p64, %s65, %s66
      %p70 = pneg %p64
      %p71 = scmp.eq.s32.totalorder %s13, 1
      %p72 = por %p70, %p71
      %p73 = scmp.ne.s32.totalorder %s65, %s68
      %p74 = scmp.eq.s32.totalorder %s13, 0
      %p75 = por %p73, %p74
      %p76 = scmp.ne.s32.totalorder %s65, %s68
      %p77 = scmp.eq.s32.totalorder %s18, 1
      %p78 = por %p76, %p77
      %p79 = scmp.ne.s32.totalorder %s68, %s69
      %p80 = scmp.eq.s32.totalorder %s18, 0
      %p81 = por %p79, %p80
      %p82 = scmp.ne.s32.totalorder %s68, %s69
      %p83 = scmp.eq.s32.totalorder %s19, 1
      %p84 = por %p82, %p83
      %p86 = scmp.ne.s32.totalorder %s69, %s85
      %p87 = scmp.eq.s32.totalorder %s19, 0
      %p88 = por %p86, %p87
      %p89 = scmp.le.s32.totalorder 1, %s13
      %p90 = scmp.lt.s32.totalorder %s13, 3
      %p91 = pnand %p89, %p90
      %p92 = pneg %p91
      // Predicated region
      $region9: #{tpu_custom_call.1} parent=5 // pred_check
        _
      $region10: #{tpu_custom_call.1} parent=5 // pred_check_branch
        %94 = sbr.rel (%p91) target = $region12
      $region11: #{tpu_custom_call.1} parent=5 // pred_region
        %s95 = ssub.s32 %s13, 1
      $region12: #{tpu_custom_call.1} parent=5 // pred_fallthru
        _
      %p96 = scmp.lt.s32.totalorder %s13, 2
      // Predicated region
      $region13: #{tpu_custom_call.1} parent=5 // pred_check
        %p97 = pneg %p96
      $region14: #{tpu_custom_call.1} parent=5 // pred_check_branch
        %99 = sbr.rel (%p97) target = $region16
      $region15: #{tpu_custom_call.1} parent=5 // pred_region
        // Predicated region
        $region17: #{tpu_custom_call.1} parent=15 // pred_check
          %p100 = pneg %p47
        $region18: #{tpu_custom_call.1} parent=15 // pred_check_branch
          %102 = sbr.rel (%p100) target = $region20
        $region19: #{tpu_custom_call.1} parent=15 // pred_region
          %s103 = sand.u32 %s37, 1
          %s104 = scalar_lea.sflag [#allocation3], %s103
          %s105 = sand.u32 %s37, 1
          %s106 = smul.addr %s105, 8
          %s107 = scalar_lea.vmem [#allocation2], %s106
          %109 = vsyncadd %s104, 0
          %s110 = smul.addr %s20, 2
          %s111 = sadd.s32 %s21, %s110
          %s112 = smul.addr %s111, 8
          %s113 = scalar_lea.hbm %s0, %s112
          %s115 = sshll.u32 %s113, 4
          %s116 = int_to_ptr.hbm [resolvable:$true] %s115
          %s117 = sshll.u32 %s107, 4
          %s118 = int_to_ptr.vmem [resolvable:$true] %s117
          %120 = dma.hbm_to_vmem [thread:$0]  %s116, 128, %s118, %s104
        $region20: #{tpu_custom_call.1} parent=15 // pred_fallthru
          _
      $region16: #{tpu_custom_call.1} parent=5 // pred_fallthru
        _
      %p121 = scmp.le.s32.totalorder 1, %s13
      %p122 = scmp.lt.s32.totalorder %s13, 3
      %p123 = pnand %p121, %p122
      %p124 = pneg %p123
      // Predicated region
      $region21: #{tpu_custom_call.1} parent=5 // pred_check
        _
      $region22: #{tpu_custom_call.1} parent=5 // pred_check_branch
        %126 = sbr.rel (%p123) target = $region24
      $region23: #{tpu_custom_call.1} parent=5 // pred_region
        %s127 = ssub.s32 %s13, 1
        %s128 = sand.u32 %s40, 1
        %s129 = scalar_lea.sflag [#allocation3], %s128
        %s130 = sand.u32 %s40, 1
        %s131 = smul.addr %s130, 8
        %s132 = scalar_lea.vmem [#allocation2], %s131
        // Predicated region
        $region25: #{tpu_custom_call.1} parent=23 // pred_check
          %p133 = pneg %p53
        $region26: #{tpu_custom_call.1} parent=23 // pred_check_branch
          %135 = sbr.rel (%p133) target = $region28
        $region27: #{tpu_custom_call.1} parent=23 // pred_region
          %137 = dma.done %s129, 128
        $region28: #{tpu_custom_call.1} parent=23 // pred_fallthru
          _
        %s138 = sand.u32 %s40, 1
        %s139 = scalar_lea.sflag [#allocation3], %s138
        %s140 = sand.u32 %s40, 1
        %s141 = smul.addr %s140, 8
        %s142 = scalar_lea.vmem [#allocation2], %s141
        %p143 = pneg %p53
        %p144 = pneg %p50
        %p145 = pneg %p81
        %p146 = pneg %p78
        %s147 = sand.u32 %s68, 1
        %s148 = scalar_lea.sflag [#allocation4], %s147
        %s149 = sand.u32 %s68, 1
        %s150 = smul.addr %s149, 8
        %s151 = scalar_lea.vmem [#allocation5], %s150
        %s152 = smul.u32 %s22, 8
        %v153 = vld [vmem:[%s132] sm:$0xff]
        %v154 = vmax.f32 %v153, 0.0
        %p155 = scmp.lt.s32.totalorder %s152, 0
        %s156 = ssub.s32 0, %s152
        %s157 = scalar_select %p155, %s156, %s152
        %s158 = sand.u32 %s157, 3
        %s159 = ssub.s32 0, %s158
        %s160 = scalar_select %p155, %s159, %s158
        %p161 = scmp.ne.s32.totalorder %s160, 0
        %p162 = scmp.lt.s32.totalorder %s160, 0
        %p163 = pnand %p162, %p161
        %p164 = pneg %p163
        %s165 = sadd.s32 %s160, 4
        %s166 = scalar_select %p164, %s165, %s160
        %s167 = ssub.s32 4, %s166
        %p168 = scmp.lt.s32.totalorder %s167, 0
        %s169 = ssub.s32 0, %s167
        %s170 = scalar_select %p168, %s169, %s167
        %s171 = sand.u32 %s170, 3
        %s172 = ssub.s32 0, %s171
        %s173 = scalar_select %p168, %s172, %s171
        %p174 = scmp.ne.s32.totalorder %s173, 0
        %p175 = scmp.lt.s32.totalorder %s173, 0
        %p176 = pnand %p175, %p174
        %p177 = pneg %p176
        %s178 = sadd.s32 %s173, 4
        %s179 = scalar_select %p177, %s178, %s173
        %p180 = scmp.lt.s32.totalorder %s179, 8
        // Predicated region
        $region29: #{tpu_custom_call.1} parent=23 // pred_check
          %p181 = pneg %p180
        $region30: #{tpu_custom_call.1} parent=23 // pred_check_branch
          %183 = sbr.rel (%p181) target = $region32
        $region31: #{tpu_custom_call.1} parent=23 // pred_region
          %v184 = vlaneseq
          %v185 = vshrl.u32 %v184, 7
          %v186 = vstv %s152
          %v187 = vadd.s32 %v186, %v185
          %v188 = vand.u32 %v187, 3
          %vm189 = vcmp.eq.s32.totalorder %v188, 0
          %v190 = vxor.u32 %v153, 2147483648
          %v191 = vmul.f32 %v190, 1.442695
          %v192 = vpow.pop %v191
          %v193 = vadd.f32 %v192, 1.0
          %v194 = vrcp.pop %v193
          %v195 = vmul.f32 %v193, %v194
          %v196 = vsub.f32 1.0, %v195
          %v197 = vmul.f32 %v194, %v196
          %v198 = vadd.f32 %v194, %v197
          %vm199 = vweird.f32 %v193
          %vm200 = vweird.f32 %v194
          %vm201 = vmor %vm199, %vm200
          %v202 = vsel %vm201, %v194, %v198
          %v203 = vand.u32 2147483647, %v193
          %vm204 = vcmp.eq.f32.partialorder %v203, 8.507059e+37
          %v205 = vand.u32 %v193, 2147483648
          %v206 = vor.u32 1.1754944e-38, %v205
          %v207 = vsel %vm204, %v206, %v202
          %v208 = vmul.f32 1.0, %v207
          %v209 = vsel %vm189, 1, 0
          %vm210 = vcmp.eq.s32.totalorder %v209, 1
          %v211 = vsel %vm210, %v208, %v154
          %212 = vst [vmem:[%s151] sm:$0xff] %v211
        $region32: #{tpu_custom_call.1} parent=23 // pred_fallthru
          _
        %p213 = scmp.ge.s32.totalorder %s179, 8
        // Predicated region
        $region33: #{tpu_custom_call.1} parent=23 // pred_check
          %p214 = pneg %p213
        $region34: #{tpu_custom_call.1} parent=23 // pred_check_branch
          %216 = sbr.rel (%p214) target = $region36
        $region35: #{tpu_custom_call.1} parent=23 // pred_region
          %217 = vst [vmem:[%s151] sm:$0xff] %v154
        $region36: #{tpu_custom_call.1} parent=23 // pred_fallthru
          _
        %s218 = sand.u32 %s68, 1
        %s219 = scalar_lea.sflag [#allocation4], %s218
        %s220 = sand.u32 %s68, 1
        %s221 = smul.addr %s220, 8
        %s222 = scalar_lea.vmem [#allocation5], %s221
        // Predicated region
        $region37: #{tpu_custom_call.1} parent=23 // pred_check
          %p223 = pneg %p78
        $region38: #{tpu_custom_call.1} parent=23 // pred_check_branch
          %225 = sbr.rel (%p223) target = $region40
        $region39: #{tpu_custom_call.1} parent=23 // pred_region
          %227 = vsyncadd %s219, 0
          %s228 = smul.addr %s22, 2
          %s229 = sadd.s32 %s23, %s228
          %s230 = smul.addr %s229, 8
          %s231 = scalar_lea.hbm %s1, %s230
          %s233 = sshll.u32 %s222, 4
          %s234 = int_to_ptr.vmem [resolvable:$true] %s233
          %s235 = sshll.u32 %s231, 4
          %s236 = int_to_ptr.hbm [resolvable:$true] %s235
          %238 = dma.vmem_to_hbm [thread:$0]  %s234, 128, %s236, %s219
        $region40: #{tpu_custom_call.1} parent=23 // pred_fallthru
          _
      $region24: #{tpu_custom_call.1} parent=5 // pred_fallthru
        _
      %p239 = scmp.le.s32.totalorder 2, %s13
      // Predicated region
      $region41: #{tpu_custom_call.1} parent=5 // pred_check
        %p240 = pneg %p239
      $region42: #{tpu_custom_call.1} parent=5 // pred_check_branch
        %242 = sbr.rel (%p240) target = $region44
      $region43: #{tpu_custom_call.1} parent=5 // pred_region
        %s243 = ssub.s32 %s13, 2
        // Predicated region
        $region45: #{tpu_custom_call.1} parent=43 // pred_check
          %p244 = pneg %p84
        $region46: #{tpu_custom_call.1} parent=43 // pred_check_branch
          %246 = sbr.rel (%p244) target = $region48
        $region47: #{tpu_custom_call.1} parent=43 // pred_region
          %s247 = sand.u32 %s69, 1
          %s248 = scalar_lea.sflag [#allocation4], %s247
          %s249 = sand.u32 %s69, 1
          %s250 = smul.addr %s249, 8
          %s251 = scalar_lea.vmem [#allocation5], %s250
          %253 = dma.done %s248, 128
        $region48: #{tpu_custom_call.1} parent=43 // pred_fallthru
          _
      $region44: #{tpu_custom_call.1} parent=5 // pred_fallthru
        _
    $region6: #{tpu_custom_call.1} parent=1 // loop_footer
      %s17 = sadd.s32 1, %s13
    $region7: #{tpu_custom_call.1} parent=1 // loop_footer_branch
      %12 = sbr.rel target = $region3
    $region8: #{tpu_custom_call.1} parent=1 // loop_exit
      _
    %254 = vsyncpa [#allocation3], 1
    %s255 = scalar_lea.sflag [#allocation3], 1
    %256 = vsyncpa %s255, 1
    %257 = vsyncpa [#allocation4], 1
    %s258 = scalar_lea.sflag [#allocation4], 1
    %259 = vsyncpa %s258, 1

</llo_original>
